<compile_context>
chip_gen: v7x
topology: tpu7x:2x2x1
jax: 0.10.0
libtpu: 0.0.40
codegen_flags: <defaults>
</compile_context>

<pallas_src>
import jax
import jax.numpy as jnp
from jax import lax
from jax.experimental import pallas as pl
from jax.experimental.pallas import tpu as pltpu


def _round_up(x, m):
    return ((x + m - 1) // m) * m


def _round_down(x, m):
    return (x // m) * m


def _auto_budgets():
    """(target input-block bytes, scoped-VMEM limit bytes), generation aware."""
    cap = None
    try:
        cap = getattr(pltpu.get_tpu_info(), "vmem_capacity_bytes", None)
    except Exception:
        cap = None
    if cap is not None and cap >= (96 << 20):   # v5e / v6e: 128 MiB physical VMEM
        return 8 << 20, 64 << 20
    return 4 << 20, 32 << 20                    # v7x-class: 64 MiB physical VMEM


def _choose_tiles(B, C, HW, itemsize, target_block_bytes):
    """Pick (batch_tile, hw_tile, c_tile, sublane_pack)."""
    sub = max(1, 32 // itemsize)        # sublane pack: 8 f32, 16 bf16, 32 int8

    # Batch tile: full batch, or a multiple of 8 (dense output stores, legal block).
    bt = B if B <= 8 else 8

    # Lane tile: multiple of 128, or the full HW extent only when HW < 128.
    hw_cap = 512                         # keeps per-chunk f32 slabs << vreg file
    if HW <= 128:
        hw_tile = HW
    elif HW % 128 == 0:
        hw_tile = min(HW, hw_cap)
    else:
        hw_tile = min(_round_down(HW, 128), hw_cap)

    # v7x megacore: guarantee >= 2 parallel (b, hw) blocks for non-tiny tensors.
    total_bytes = B * C * HW * itemsize
    if total_bytes >= (4 << 20):
        while (pl.cdiv(B, bt) * pl.cdiv(HW, hw_tile)) < 2 and hw_tile >= 256:
            smaller = _round_down(hw_tile // 2, 128)
            if smaller < 128:
                break
            hw_tile = smaller

    # Channel tile from the byte budget; account for sublane padding of C so the
    # real VMEM footprint matches the target (matters for small / odd C).
    c_pad = _round_up(C, sub)
    row_bytes = max(1, bt * hw_tile * itemsize)
    ct_budget = target_block_bytes // row_bytes
    if ct_budget >= c_pad:
        ct = C                                        # whole channel extent
    else:
        ct = max(sub, _round_down(ct_budget, sub))    # multiple of sublane pack

    return bt, hw_tile, ct, sub


def _make_avg_kernel(C, ct, chunk, mask_tail_c):
    """Build the kernel for static (C, channel-tile, chunk, ragged-C) config."""
    n_full = ct // chunk
    rem = ct - n_full * chunk
    inv_c = 1.0 / float(C)

    def kernel(x_ref, o_ref, acc_ref):
        # x_ref: (bt, ct, hw_tile), o_ref: (bt, hw_tile), acc_ref: f32 scratch.
        c_idx = pl.program_id(2)

        @pl.when(c_idx == 0)
        def _():
            acc_ref[...] = jnp.zeros_like(acc_ref)

        def slab_sum(start, size):
            xs = x_ref[:, pl.ds(start, size), :].astype(jnp.float32)
            if mask_tail_c:
                # Ragged last C block: zero out rows that fall beyond C.
                rows = start + lax.broadcasted_iota(jnp.int32, xs.shape, 1)
                xs = jnp.where(c_idx * ct + rows < C, xs, 0.0)
            return jnp.sum(xs, axis=1)

        acc = acc_ref[...]
        if n_full == 1:
            acc = acc + slab_sum(0, chunk)
        elif n_full > 1:
            def body(i, a):
                start = pl.multiple_of(i * chunk, chunk)
                return a + slab_sum(start, chunk)
            acc = lax.fori_loop(0, n_full, body, acc, unroll=min(n_full, 8))
        if rem:
            acc = acc + slab_sum(n_full * chunk, rem)
        acc_ref[...] = acc

        @pl.when(c_idx == pl.num_programs(2) - 1)
        def _():
            o_ref[...] = (acc_ref[...] * jnp.float32(inv_c)).astype(o_ref.dtype)

    return kernel


def avg_neck(x, *, target_block_bytes=None, vmem_limit_bytes=None):
    """AVG neck: y = x.mean(dim=1). x is (B, C, H, W) -> y is (B, H, W)."""
    B, C, H, W = x.shape
    HW = H * W
    itemsize = jnp.dtype(x.dtype).itemsize

    auto_target, auto_limit = _auto_budgets()
    target = target_block_bytes if target_block_bytes is not None else auto_target
    vmem_limit = vmem_limit_bytes if vmem_limit_bytes is not None else auto_limit

    bt, hw_tile, ct, chunk = _choose_tiles(B, C, HW, itemsize, target)
    nb = pl.cdiv(B, bt)
    nhw = pl.cdiv(HW, hw_tile)
    nc = pl.cdiv(C, ct)
    mask_tail_c = (nc > 1) and (C % ct != 0)

    kernel = _make_avg_kernel(C, ct, chunk, mask_tail_c)

    xf = x.reshape(B, C, HW)  # free reshape (B-major layout preserved)

    out = pl.pallas_call(
        kernel,
        out_shape=jax.ShapeDtypeStruct((B, HW), x.dtype),
        grid_spec=pltpu.PrefetchScalarGridSpec(
            num_scalar_prefetch=0,
            grid=(nb, nhw, nc),
            in_specs=[pl.BlockSpec((bt, ct, hw_tile), lambda b, h, c: (b, c, h))],
            out_specs=pl.BlockSpec((bt, hw_tile), lambda b, h, c: (b, h)),
            scratch_shapes=[pltpu.VMEM((bt, hw_tile), jnp.float32)],
        ),
        compiler_params=pltpu.CompilerParams(
            # batch / spatial axes are independent -> sharded across v7x megacore;
            # the channel (reduction) axis is last and "arbitrary".
            dimension_semantics=("parallel", "parallel", "arbitrary"),
            vmem_limit_bytes=vmem_limit,
        ),
        cost_estimate=pl.CostEstimate(
            flops=B * C * HW,
            transcendentals=0,
            bytes_accessed=(B * C * HW + B * HW) * itemsize,
        ),
    )(xf)
    return out.reshape(B, H, W)


if __name__ == "__main__":
    key = jax.random.PRNGKey(0)
    k1, k2 = jax.random.split(key)

    # Case 1: small conv-feature-like input (B=2, C=4, H=W=16).
    x1 = jax.random.normal(k1, (2, 4, 16, 16), dtype=jnp.float32)
    y1 = avg_neck(x1)
    jax.block_until_ready(y1)
    ref1 = jnp.mean(x1, axis=1)
    assert y1.shape == ref1.shape, (y1.shape, ref1.shape)
    assert jnp.allclose(y1, ref1, atol=1e-5, rtol=1e-5), "case 1 mismatch"

    # Case 2: unaligned spatial extent + chunked C accumulation (HW=100, C=20).
    x2 = jax.random.normal(k2, (2, 20, 10, 10), dtype=jnp.float32)
    ref2 = jnp.mean(x2, axis=1)
    y2 = avg_neck(x2)
    jax.block_until_ready(y2)
    assert jnp.allclose(y2, ref2, atol=1e-5, rtol=1e-5), "case 2 mismatch"

    # Case 3: force the channel grid axis + ragged-C masking path with a tiny
    # block budget (exercises the accumulator pl.when init/finalize logic).
    y3 = avg_neck(x2, target_block_bytes=4096, vmem_limit_bytes=32 << 20)
    jax.block_until_ready(y3)
    assert jnp.allclose(y3, ref2, atol=1e-5, rtol=1e-5), "case 3 mismatch"

    print("KERNEL_OK")
</pallas_src>

<mosaic_0001>
module attributes {stable_mosaic.version = 11 : i64} {
  func.func @kernel(%arg0: i32, %arg1: i32, %arg2: i32, %arg3: memref<2x4x256xf32, #tpu.memory_space<vmem>>, %arg4: memref<2x256xf32, #tpu.memory_space<vmem>>, %arg5: memref<2x256xf32, #tpu.memory_space<vmem>>) attributes {dimension_semantics = [#tpu.dimension_semantics<parallel>, #tpu.dimension_semantics<parallel>, #tpu.dimension_semantics<arbitrary>], iteration_bounds = array<i64: 1, 1, 1>, scalar_prefetch = 0 : i64, scratch_operands = 1 : i64, tpu.core_type = #tpu.core_type<tc>, window_params = [{transform_indices = @transform_0, window_bounds = array<i64: 2, 4, 256>}, {transform_indices = @transform_1, window_bounds = array<i64: 2, 256>}]} {
    %c0_i32 = arith.constant 0 : i32
    %0 = arith.cmpi eq, %arg2, %c0_i32 : i32
    %1 = arith.extui %0 : i1 to i32
    %c0_i32_0 = arith.constant 0 : i32
    %2 = arith.cmpi ne, %1, %c0_i32_0 : i32
    scf.if %2 {
      %cst_9 = arith.constant 0.000000e+00 : f32
      %11 = vector.broadcast %cst_9 : f32 to vector<2x256xf32>
      %c0_10 = arith.constant 0 : index
      %c0_11 = arith.constant 0 : index
      %12 = vector.load %arg5[%c0_10, %c0_11] : memref<2x256xf32, #tpu.memory_space<vmem>>, vector<2x256xf32>
      tpu.vector_store %arg5[%c0_10, %c0_11], %11 {strides = array<i32>} : memref<2x256xf32, #tpu.memory_space<vmem>>, vector<2x256xf32>,
    } else {
    }
    %c0 = arith.constant 0 : index
    %c0_1 = arith.constant 0 : index
    %3 = vector.load %arg5[%c0, %c0_1] : memref<2x256xf32, #tpu.memory_space<vmem>>, vector<2x256xf32>
    %c0_2 = arith.constant 0 : index
    %c0_3 = arith.constant 0 : index
    %c0_4 = arith.constant 0 : index
    %4 = vector.load %arg3[%c0_2, %c0_3, %c0_4] : memref<2x4x256xf32, #tpu.memory_space<vmem>>, vector<2x4x256xf32>
    %cst = arith.constant dense<0.000000e+00> : vector<2x256xf32>
    %5 = vector.multi_reduction <add>, %4, %cst [1] : vector<2x4x256xf32> to vector<2x256xf32>
    %6 = arith.addf %3, %5 : vector<2x256xf32>
    %c0_5 = arith.constant 0 : index
    %c0_6 = arith.constant 0 : index
    %7 = vector.load %arg5[%c0_5, %c0_6] : memref<2x256xf32, #tpu.memory_space<vmem>>, vector<2x256xf32>
    tpu.vector_store %arg5[%c0_5, %c0_6], %6 {strides = array<i32>} : memref<2x256xf32, #tpu.memory_space<vmem>>, vector<2x256xf32>,
    %c0_i32_7 = arith.constant 0 : i32
    %8 = arith.cmpi eq, %arg2, %c0_i32_7 : i32
    %9 = arith.extui %8 : i1 to i32
    %c0_i32_8 = arith.constant 0 : i32
    %10 = arith.cmpi ne, %9, %c0_i32_8 : i32
    scf.if %10 {
      %c0_9 = arith.constant 0 : index
      %c0_10 = arith.constant 0 : index
      %11 = vector.load %arg5[%c0_9, %c0_10] : memref<2x256xf32, #tpu.memory_space<vmem>>, vector<2x256xf32>
      %cst_11 = arith.constant 2.500000e-01 : f32
      %12 = vector.broadcast %cst_11 : f32 to vector<2x256xf32>
      %13 = arith.mulf %11, %12 : vector<2x256xf32>
      %c0_12 = arith.constant 0 : index
      %c0_13 = arith.constant 0 : index
      %14 = vector.load %arg4[%c0_12, %c0_13] : memref<2x256xf32, #tpu.memory_space<vmem>>, vector<2x256xf32>
      tpu.vector_store %arg4[%c0_12, %c0_13], %13 {strides = array<i32>} : memref<2x256xf32, #tpu.memory_space<vmem>>, vector<2x256xf32>,
    } else {
    }
    return
  }
  func.func @transform_0(%arg0: i32, %arg1: i32, %arg2: i32) -> (i32, i32, i32) {
    %c0_i32 = arith.constant 0 : i32
    return %arg0, %arg2, %arg1 : i32, i32, i32
  }
  func.func @transform_1(%arg0: i32, %arg1: i32, %arg2: i32) -> (i32, i32) {
    %c0_i32 = arith.constant 0 : i32
    return %arg0, %arg1 : i32, i32
  }
}

</mosaic_0001>

<llo_original>
// kernel: tpu_custom_call.1
$region0: #{tpu_custom_call.1}
  #allocation0 [shape = 'u32[]', space=smem, size = 0x4, offset = 0x4, fixed_abs, tag = 'smem constant byte address 0x4 - core index']
  #allocation1 [shape = 'u32[144,128]{1,0:T(1,128)}', space=vmem, size = 0x12000, scoped, tag = 'internal scratch']
  #allocation2 [shape = 'f32[2,256]{1,0:T(2,128)}', space=vmem, size = 0x800, scoped, tag = 'scratch operand']
  %s0 = inlined_call_operand.hbm [shape: f32[2,4,256], index: 0, kind: input, shape index: {}]
  %s1 = inlined_call_operand.hbm [shape: f32[2,256], index: 1, kind: output, shape index: {}]
  %s2 = sld [smem:[#allocation0]]
  $region26: #{tpu_custom_call.1} parent=0
    _
  %s4 = ssub.s32 1, %s2
  %s5 = scalar_select 0, %s4, %s2
  $region1: #{tpu_custom_call.1} parent=0
    #allocation3 [shape = 'u8[8192]{0}', space=vmem, size = 0x2000, scoped, tag = 'input window, operand 0, single buffered']
    #allocation4 [shape = 's32[1]{0}', space=sflag, size = 0x4, scoped, tag = 'scoped memory for tpu_custom_call.1']
    #allocation5 [shape = 's32[1]{0}', space=sflag, size = 0x4, scoped, tag = 'scoped memory for tpu_custom_call.1']
    #allocation6 [shape = 'u8[2048]{0}', space=vmem, size = 0x800, scoped, tag = 'output window, operand 0, single buffered']
    %6 = vsyncpa [#allocation4], 0
    %7 = vsyncpa [#allocation5], 0
    // Predicated region
    $region2: #{tpu_custom_call.1} parent=1 // pred_check
      _
    $region3: #{tpu_custom_call.1} parent=1 // pred_check_branch
      %9 = sbr.rel (0) target = $region5
    $region4: #{tpu_custom_call.1} parent=1 // pred_region
      %s11 = ssub.s32 256, 256
      %12 = vsyncadd [#allocation4], %s11
      %s13 = sshll.u32 [#allocation3], 4
      %s14 = int_to_ptr.vmem [resolvable:$true] %s13
      %19 = dma.hbm_to_vmem [thread:$0]  %s0, 256, %s14, [#allocation4], 128, 128, 8
    $region5: #{tpu_custom_call.1} parent=1 // pred_fallthru
      _
    // Predicated region
    $region6: #{tpu_custom_call.1} parent=1 // pred_check
      _
    $region7: #{tpu_custom_call.1} parent=1 // pred_check_branch
      %21 = sbr.rel (0) target = $region9
    $region8: #{tpu_custom_call.1} parent=1 // pred_region
      %22 = dma.done [#allocation4], 256
    $region9: #{tpu_custom_call.1} parent=1 // pred_fallthru
      _
    %p23 = scmp.eq.s32.totalorder 0, 0
    // Predicated region
    $region10: #{tpu_custom_call.1} parent=1 // pred_check
      %p24 = pneg %p23
    $region11: #{tpu_custom_call.1} parent=1 // pred_check_branch
      %26 = sbr.rel (%p24) target = $region13
    $region12: #{tpu_custom_call.1} parent=1 // pred_region
      %27 = vst [vmem:[#allocation2] sm:$0xf] 0.0
    $region13: #{tpu_custom_call.1} parent=1 // pred_fallthru
      _
    %v28 = vld [vmem:[#allocation2] sm:$0xf]
    %v29 = vld [vmem:[#allocation3] sm:$0xff]
    %v30 = vld [vmem:[#allocation3 + $0x8] sm:$0xff]
    %v33 = vcombine.high %v29, %v29
    %v34 = vcombine.high %v30, %v30
    %vm37 = vcmask 1043456
    %v38 = vsel %vm37, %v29, 0.0
    %v39 = vrot.slane %v38, 4
    %v40 = vadd.f32 %v38, %v39
    %v41 = vrot.slane %v40, 2
    %v42 = vadd.f32 %v40, %v41
    %v43 = vrot.slane %v42, 1
    %v44 = vadd.f32 %v42, %v43
    %v45 = vsel %vm37, %v33, 0.0
    %v46 = vrot.slane %v45, 4
    %v47 = vadd.f32 %v45, %v46
    %v48 = vrot.slane %v47, 2
    %v49 = vadd.f32 %v47, %v48
    %v50 = vrot.slane %v49, 1
    %v51 = vadd.f32 %v49, %v50
    %v52 = vsel %vm37, %v30, 0.0
    %v53 = vrot.slane %v52, 4
    %v54 = vadd.f32 %v52, %v53
    %v55 = vrot.slane %v54, 2
    %v56 = vadd.f32 %v54, %v55
    %v57 = vrot.slane %v56, 1
    %v58 = vadd.f32 %v56, %v57
    %v59 = vsel %vm37, %v34, 0.0
    %v60 = vrot.slane %v59, 4
    %v61 = vadd.f32 %v59, %v60
    %v62 = vrot.slane %v61, 2
    %v63 = vadd.f32 %v61, %v62
    %v64 = vrot.slane %v63, 1
    %v65 = vadd.f32 %v63, %v64
    %v70 = vcombine.low %v44, %v51
    %v72 = vunpack.c.l.s4 1983009808
    %v73 = vunpack.c.0.s8 %v72
    %v74 = vlaneseq
    %v75 = vshrl.u32 %v74, 7
    %v76 = vsub.s32 %v73, %v75
    %v77 = vrot.slane %v70, %v76
    %v78 = vcombine.low %v58, %v65
    %v80 = vunpack.c.l.s4 1983009808
    %v81 = vunpack.c.0.s8 %v80
    %v82 = vlaneseq
    %v83 = vshrl.u32 %v82, 7
    %v84 = vsub.s32 %v81, %v83
    %v85 = vrot.slane %v78, %v84
    %vm86 = vcmask 1044484
    %v87 = vsel %vm86, %v77, %v77
    %vm88 = vcmask 1046534
    %v89 = vsel %vm88, %v77, %v87
    %v90 = vrot.slane %v85, 7
    %vm91 = vcmask 1041409
    %v92 = vsel %vm91, %v90, %v89
    %vm93 = vcmask 1043459
    %v94 = vsel %vm93, %v90, %v92
    %vm95 = vcmask 1045509
    %v96 = vsel %vm95, %v90, %v94
    %vm97 = vcmask 1047559
    %v98 = vsel %vm97, %v90, %v96
    %v100 = vadd.f32 %v28, %v98
    %101 = vst [vmem:[#allocation2] sm:$0xf] %v100
    // Predicated region
    $region14: #{tpu_custom_call.1} parent=1 // pred_check
      %p102 = pneg %p23
    $region15: #{tpu_custom_call.1} parent=1 // pred_check_branch
      %104 = sbr.rel (%p102) target = $region17
    $region16: #{tpu_custom_call.1} parent=1 // pred_region
      %v105 = vld [vmem:[#allocation2] sm:$0xf]
      %v106 = vmul.f32 %v105, 0.25
      %107 = vst [vmem:[#allocation6] sm:$0xf] %v106
    $region17: #{tpu_custom_call.1} parent=1 // pred_fallthru
      _
    // Predicated region
    $region18: #{tpu_custom_call.1} parent=1 // pred_check
      _
    $region19: #{tpu_custom_call.1} parent=1 // pred_check_branch
      %109 = sbr.rel (0) target = $region21
    $region20: #{tpu_custom_call.1} parent=1 // pred_region
      %s111 = ssub.s32 64, 64
      %112 = vsyncadd [#allocation5], %s111
      %s114 = sshll.u32 [#allocation6], 4
      %s115 = int_to_ptr.vmem [resolvable:$true] %s114
      %117 = dma.vmem_to_hbm [thread:$0]  %s115, 64, %s1, [#allocation5]
    $region21: #{tpu_custom_call.1} parent=1 // pred_fallthru
      _
    // Predicated region
    $region22: #{tpu_custom_call.1} parent=1 // pred_check
      _
    $region23: #{tpu_custom_call.1} parent=1 // pred_check_branch
      %119 = sbr.rel (0) target = $region25
    $region24: #{tpu_custom_call.1} parent=1 // pred_region
      %120 = dma.done [#allocation5], 64
    $region25: #{tpu_custom_call.1} parent=1 // pred_fallthru
      _
    %121 = vsyncpa [#allocation4], 1
    %122 = vsyncpa [#allocation5], 1

</llo_original>
